<compile_context>
chip_gen: v7x
topology: tpu7x:2x2x1
jax: 0.10.0
libtpu: 0.0.40
codegen_flags: <defaults>
</compile_context>

<pallas_src>
import functools

import jax
import jax.numpy as jnp
from jax.experimental import pallas as pl
from jax.experimental.pallas import tpu as pltpu


def _contrastive_loss_kernel(sim_ref, lab_ref, out_ref, acc_ref, *,
                             margin, inv_count, n_rows, row_tile,
                             tiles_per_split, first_masked_tile, needs_mask,
                             binary_labels):
    p = pl.program_id(0)   # "parallel" split axis (-> 2 TensorCores on v7x)
    k = pl.program_id(1)   # "arbitrary" reduction axis over row tiles

    sim = sim_ref[...].astype(jnp.float32)
    d1 = 1.0 - sim
    hinge = jnp.maximum(sim - margin, 0.0)
    q2 = (hinge * hinge) * 2.0

    if binary_labels:
        # Compare+select: exact for {0,1} labels, fewer VALU ops, no upcast.
        contrib = jnp.where(lab_ref[...] != 0, d1 * d1, q2)
    else:
        # Exact PyTorch semantics for arbitrary (soft) labels.
        lab = lab_ref[...].astype(jnp.float32)
        contrib = lab * (d1 * d1) + (1.0 - lab) * q2

    def _accumulate(val):
        # Fold zero-init into the first step: saves a full-tile zero store +
        # reload per split.
        @pl.when(k == 0)
        def _():
            acc_ref[...] = val

        @pl.when(k != 0)
        def _():
            acc_ref[...] += val

    if needs_mask:
        tile_idx = p * tiles_per_split + k
        is_edge = tile_idx >= first_masked_tile   # tail tile or clamped tile

        @pl.when(is_edge)
        def _():
            row_ids = tile_idx * row_tile + jax.lax.broadcasted_iota(
                jnp.int32, contrib.shape, 0)
            _accumulate(jnp.where(row_ids < n_rows, contrib, 0.0))

        @pl.when(jnp.logical_not(is_edge))
        def _():
            _accumulate(contrib)
    else:
        _accumulate(contrib)

    @pl.when(k == tiles_per_split - 1)
    def _():
        # Single cross-lane/sublane reduce + scale, once per split.
        out_ref[...] = jnp.sum(acc_ref[...], keepdims=True) * inv_count


def _device_kind():
    try:
        return jax.devices()[0].device_kind.lower()
    except Exception:
        return ""


def _default_n_split():
    # 2-way "parallel" axis only pays off on chips with 2 TensorCores.
    kind = _device_kind()
    return 2 if any(t in kind for t in ("v7", "v4", "v5p")) else 1


def _default_target_bytes():
    # v7x streams a 1 MiB block in <1 us -> use ~4 MiB blocks to amortize the
    # fixed per-grid-step overhead; 2 MiB is plenty for v5e/v6e.
    return (4 << 20) if "v7" in _device_kind() else (2 << 20)


def _sublane_multiple(dtype):
    # f32 -> 8, bf16 -> 16, int8/bool -> 32 (min sublane tile per dtype).
    item = jnp.dtype(dtype).itemsize
    return max(8, 32 // max(1, item))


def _auto_row_tile(n, d, sim_dtype, lab_dtype, target_bytes):
    """Rows per block: ~target_bytes of sim per block, rounded to the sublane
    multiple required by both input dtypes, never exceeding the array."""
    mult = max(_sublane_multiple(sim_dtype), _sublane_multiple(lab_dtype))
    bytes_per_row = max(1, jnp.dtype(sim_dtype).itemsize) * d
    target = max(mult, ((target_bytes // bytes_per_row) // mult) * mult)
    if n >= target:
        return target
    if n >= mult:
        return (n // mult) * mult
    return n  # tiny input: block equals the full row extent (always legal)


def contrastive_loss(sim, labels, margin=0.1, *, row_tile=None, n_split=None,
                     binary_labels=False):
    """Mean contrastive loss over 2-D (N, D) inputs using a Pallas TPU kernel.

    binary_labels=True enables a cheaper compare+select path that is exact
    only when labels are strictly {0, 1}.
    """
    assert sim.shape == labels.shape and sim.ndim == 2
    n, d = sim.shape

    if n_split is None:
        n_split = _default_n_split()
    if row_tile is None:
        row_tile = _auto_row_tile(n, d, sim.dtype, labels.dtype,
                                  _default_target_bytes())

    total_tiles = pl.cdiv(n, row_tile)
    n_split = max(1, min(n_split, total_tiles))  # no fully-redundant splits
    tiles_per_split = pl.cdiv(total_tiles, n_split)
    # First logical tile index that requires row masking (partial tail tile
    # and/or clamped tiles past the end of the array).
    first_masked_tile = total_tiles - 1 if (n % row_tile != 0) else total_tiles
    needs_mask = first_masked_tile < n_split * tiles_per_split

    inv_count = 1.0 / float(n * d)

    kernel = functools.partial(
        _contrastive_loss_kernel,
        margin=float(margin), inv_count=inv_count, n_rows=n, row_tile=row_tile,
        tiles_per_split=tiles_per_split, first_masked_tile=first_masked_tile,
        needs_mask=needs_mask, binary_labels=binary_labels)

    def in_index_map(p, k):
        # A split may be assigned a couple of logical tiles past the end; clamp
        # the block index (those tiles re-read the last block and are fully
        # masked to zero inside the kernel).
        return (jnp.minimum(p * tiles_per_split + k, total_tiles - 1), 0)

    # Double-buffered sim + label inputs, plus the full-tile f32 accumulator.
    # TODO(synk): optionally shrink the accumulator to (8, d) via a sublane
    # fold if VMEM ever becomes tight on v7x (measure that the reshape stays
    # a no-op first).
    sim_blk = row_tile * d * jnp.dtype(sim.dtype).itemsize
    lab_blk = row_tile * d * jnp.dtype(labels.dtype).itemsize
    acc_blk = row_tile * d * 4
    vmem_need = 2 * sim_blk + 2 * lab_blk + acc_blk
    vmem_limit = min(64 << 20, max(32 << 20, int(vmem_need * 1.25) + (2 << 20)))

    partials = pl.pallas_call(
        kernel,
        out_shape=jax.ShapeDtypeStruct((n_split, 1), jnp.float32),
        grid_spec=pltpu.PrefetchScalarGridSpec(
            num_scalar_prefetch=0,
            grid=(n_split, tiles_per_split),
            in_specs=[
                pl.BlockSpec((row_tile, d), in_index_map),
                pl.BlockSpec((row_tile, d), in_index_map),
            ],
            out_specs=pl.BlockSpec((1, 1), lambda p, k: (p, 0)),
            scratch_shapes=[pltpu.VMEM((row_tile, d), jnp.float32)],
        ),
        compiler_params=pltpu.CompilerParams(
            dimension_semantics=("parallel", "arbitrary"),
            vmem_limit_bytes=vmem_limit,
        ),
    )(sim, labels)

    # Combine the per-split partial means outside the kernel.
    return jnp.sum(partials)


def _reference_loss(sim, labels, margin=0.1):
    sim = sim.astype(jnp.float32)
    labels = labels.astype(jnp.float32)
    pos = labels * (1.0 - sim) ** 2
    neg = (1.0 - labels) * jnp.maximum(sim - margin, 0.0) ** 2 * 2.0
    return jnp.mean(pos + neg)


if __name__ == "__main__":
    key = jax.random.PRNGKey(0)

    # Case 1: aligned shape, binary labels, exact-blend path.
    # Case 2: non-divisible N (tail-tile mask path), soft labels (exactness).
    # Case 3: explicit multi-tile + 2-split (clamped-tile path), select path.
    cases = [
        (16, 128, None, None, False, True),
        (44, 256, None, None, False, False),
        (72, 128, 16, 2, True, True),
    ]
    for (n, d, rt, ns, use_select, binary) in cases:
        key, k_sim, k_lab = jax.random.split(key, 3)
        sim = jax.random.uniform(k_sim, (n, d), jnp.float32, -1.0, 1.0)
        if binary:
            labels = (jax.random.uniform(k_lab, (n, d)) > 0.5).astype(jnp.float32)
        else:
            labels = jax.random.uniform(k_lab, (n, d), jnp.float32)  # soft labels

        loss = jax.block_until_ready(
            contrastive_loss(sim, labels, margin=0.1, row_tile=rt, n_split=ns,
                             binary_labels=use_select))
        ref = _reference_loss(sim, labels, margin=0.1)
        assert jnp.allclose(loss, ref, rtol=1e-5, atol=1e-6), \
            (n, d, float(loss), float(ref))

    print("KERNEL_OK")
</pallas_src>

<mosaic_0001>
module attributes {stable_mosaic.version = 11 : i64} {
  func.func @_contrastive_loss_kernel(%arg0: i32, %arg1: i32, %arg2: memref<16x128xf32, #tpu.memory_space<vmem>>, %arg3: memref<16x128xf32, #tpu.memory_space<vmem>>, %arg4: memref<1x1xf32, #tpu.memory_space<vmem>>, %arg5: memref<16x128xf32, #tpu.memory_space<vmem>>) attributes {dimension_semantics = [#tpu.dimension_semantics<parallel>, #tpu.dimension_semantics<arbitrary>], iteration_bounds = array<i64: 1, 1>, scalar_prefetch = 0 : i64, scratch_operands = 1 : i64, tpu.core_type = #tpu.core_type<tc>, window_params = [{transform_indices = @transform_0, window_bounds = array<i64: 16, 128>}, {transform_indices = @transform_1, window_bounds = array<i64: 16, 128>}, {transform_indices = @transform_2, window_bounds = array<i64: 1, 1>}]} {
    %c0 = arith.constant 0 : index
    %c0_0 = arith.constant 0 : index
    %0 = vector.load %arg2[%c0, %c0_0] : memref<16x128xf32, #tpu.memory_space<vmem>>, vector<16x128xf32>
    %cst = arith.constant 1.000000e+00 : f32
    %1 = vector.broadcast %cst : f32 to vector<16x128xf32>
    %2 = arith.subf %1, %0 : vector<16x128xf32>
    %cst_1 = arith.constant 1.000000e-01 : f32
    %3 = vector.broadcast %cst_1 : f32 to vector<16x128xf32>
    %4 = arith.subf %0, %3 : vector<16x128xf32>
    %cst_2 = arith.constant 0.000000e+00 : f32
    %5 = vector.broadcast %cst_2 : f32 to vector<16x128xf32>
    %6 = arith.maximumf %4, %5 : vector<16x128xf32>
    %7 = arith.mulf %6, %6 : vector<16x128xf32>
    %cst_3 = arith.constant 2.000000e+00 : f32
    %8 = vector.broadcast %cst_3 : f32 to vector<16x128xf32>
    %9 = arith.mulf %7, %8 : vector<16x128xf32>
    %c0_4 = arith.constant 0 : index
    %c0_5 = arith.constant 0 : index
    %10 = vector.load %arg3[%c0_4, %c0_5] : memref<16x128xf32, #tpu.memory_space<vmem>>, vector<16x128xf32>
    %11 = arith.mulf %2, %2 : vector<16x128xf32>
    %12 = arith.mulf %10, %11 : vector<16x128xf32>
    %cst_6 = arith.constant 1.000000e+00 : f32
    %13 = vector.broadcast %cst_6 : f32 to vector<16x128xf32>
    %14 = arith.subf %13, %10 : vector<16x128xf32>
    %15 = arith.mulf %14, %9 : vector<16x128xf32>
    %16 = arith.addf %12, %15 : vector<16x128xf32>
    %c0_i32 = arith.constant 0 : i32
    %17 = arith.cmpi eq, %arg1, %c0_i32 : i32
    %18 = arith.extui %17 : i1 to i32
    %c0_i32_7 = arith.constant 0 : i32
    %19 = arith.cmpi ne, %18, %c0_i32_7 : i32
    scf.if %19 {
      %c0_12 = arith.constant 0 : index
      %c0_13 = arith.constant 0 : index
      %26 = vector.load %arg5[%c0_12, %c0_13] : memref<16x128xf32, #tpu.memory_space<vmem>>, vector<16x128xf32>
      tpu.vector_store %arg5[%c0_12, %c0_13], %16 {strides = array<i32>} : memref<16x128xf32, #tpu.memory_space<vmem>>, vector<16x128xf32>,
    } else {
    }
    %c0_i32_8 = arith.constant 0 : i32
    %20 = arith.cmpi ne, %arg1, %c0_i32_8 : i32
    %21 = arith.extui %20 : i1 to i32
    %c0_i32_9 = arith.constant 0 : i32
    %22 = arith.cmpi ne, %21, %c0_i32_9 : i32
    scf.if %22 {
      %c0_12 = arith.constant 0 : index
      %c0_13 = arith.constant 0 : index
      %26 = vector.load %arg5[%c0_12, %c0_13] : memref<16x128xf32, #tpu.memory_space<vmem>>, vector<16x128xf32>
      %27 = arith.addf %26, %16 : vector<16x128xf32>
      %c0_14 = arith.constant 0 : index
      %c0_15 = arith.constant 0 : index
      %28 = vector.load %arg5[%c0_14, %c0_15] : memref<16x128xf32, #tpu.memory_space<vmem>>, vector<16x128xf32>
      tpu.vector_store %arg5[%c0_14, %c0_15], %27 {strides = array<i32>} : memref<16x128xf32, #tpu.memory_space<vmem>>, vector<16x128xf32>,
    } else {
    }
    %c0_i32_10 = arith.constant 0 : i32
    %23 = arith.cmpi eq, %arg1, %c0_i32_10 : i32
    %24 = arith.extui %23 : i1 to i32
    %c0_i32_11 = arith.constant 0 : i32
    %25 = arith.cmpi ne, %24, %c0_i32_11 : i32
    scf.if %25 {
      %c0_12 = arith.constant 0 : index
      %c0_13 = arith.constant 0 : index
      %26 = vector.load %arg5[%c0_12, %c0_13] : memref<16x128xf32, #tpu.memory_space<vmem>>, vector<16x128xf32>
      %27 = vector.shape_cast %26 : vector<16x128xf32> to vector<1x16x128xf32>
      %cst_14 = arith.constant dense<0.000000e+00> : vector<1xf32>
      %28 = vector.multi_reduction <add>, %27, %cst_14 [1, 2] : vector<1x16x128xf32> to vector<1xf32>
      %29 = vector.shape_cast %28 : vector<1xf32> to vector<1x1x1xf32>
      %30 = vector.extract %29[0, 0, 0] : f32 from vector<1x1x1xf32>
      %31 = vector.broadcast %30 : f32 to vector<1x1xf32>
      %cst_15 = arith.constant 4.8828125E-4 : f32
      %32 = vector.broadcast %cst_15 : f32 to vector<1x1xf32>
      %33 = arith.mulf %31, %32 : vector<1x1xf32>
      %c0_16 = arith.constant 0 : index
      %c0_17 = arith.constant 0 : index
      %34 = vector.load %arg4[%c0_16, %c0_17] : memref<1x1xf32, #tpu.memory_space<vmem>>, vector<1x1xf32>
      tpu.vector_store %arg4[%c0_16, %c0_17], %33 {strides = array<i32>} : memref<1x1xf32, #tpu.memory_space<vmem>>, vector<1x1xf32>,
    } else {
    }
    return
  }
  func.func @transform_0(%arg0: i32, %arg1: i32) -> (i32, i32) {
    %c1_i32 = arith.constant 1 : i32
    %0 = arith.muli %arg0, %c1_i32 : i32
    %1 = arith.addi %0, %arg1 : i32
    %c0_i32 = arith.constant 0 : i32
    %2 = arith.minsi %1, %c0_i32 : i32
    %c0_i32_0 = arith.constant 0 : i32
    %c0_i32_1 = arith.constant 0 : i32
    return %2, %c0_i32_0 : i32, i32
  }
  func.func @transform_1(%arg0: i32, %arg1: i32) -> (i32, i32) {
    %c1_i32 = arith.constant 1 : i32
    %0 = arith.muli %arg0, %c1_i32 : i32
    %1 = arith.addi %0, %arg1 : i32
    %c0_i32 = arith.constant 0 : i32
    %2 = arith.minsi %1, %c0_i32 : i32
    %c0_i32_0 = arith.constant 0 : i32
    %c0_i32_1 = arith.constant 0 : i32
    return %2, %c0_i32_0 : i32, i32
  }
  func.func @transform_2(%arg0: i32, %arg1: i32) -> (i32, i32) {
    %c0_i32 = arith.constant 0 : i32
    %c0_i32_0 = arith.constant 0 : i32
    return %arg0, %c0_i32 : i32, i32
  }
}

</mosaic_0001>

<llo_original>
// kernel: tpu_custom_call.1
$region0: #{tpu_custom_call.1}
  #allocation0 [shape = 'u32[]', space=smem, size = 0x4, offset = 0x4, fixed_abs, tag = 'smem constant byte address 0x4 - core index']
  #allocation1 [shape = 'u32[144,128]{1,0:T(1,128)}', space=vmem, size = 0x12000, scoped, tag = 'internal scratch']
  #allocation2 [shape = 'f32[16,128]{1,0:T(8,128)}', space=vmem, size = 0x2000, scoped, tag = 'scratch operand']
  %s0 = inlined_call_operand.hbm [shape: f32[16,128], index: 0, kind: input, shape index: {}]
  %s1 = inlined_call_operand.hbm [shape: f32[16,128], index: 1, kind: input, shape index: {}]
  %s2 = inlined_call_operand.hbm [shape: f32[1,1], index: 2, kind: output, shape index: {}]
  %s3 = sld [smem:[#allocation0]]
  $region38: #{tpu_custom_call.1} parent=0
    _
  %s5 = ssub.s32 1, %s3
  %s6 = scalar_select 0, %s5, %s3
  $region1: #{tpu_custom_call.1} parent=0
    #allocation3 [shape = 'u8[8192]{0}', space=vmem, size = 0x2000, scoped, tag = 'input window, operand 0, single buffered']
    #allocation4 [shape = 's32[1]{0}', space=sflag, size = 0x4, scoped, tag = 'scoped memory for tpu_custom_call.1']
    #allocation5 [shape = 's32[1]{0}', space=sflag, size = 0x4, scoped, tag = 'scoped memory for tpu_custom_call.1']
    #allocation6 [shape = 'u8[8192]{0}', space=vmem, size = 0x2000, scoped, tag = 'input window, operand 1, single buffered']
    #allocation7 [shape = 's32[1]{0}', space=sflag, size = 0x4, scoped, tag = 'scoped memory for tpu_custom_call.1']
    #allocation8 [shape = 'u8[512]{0}', space=vmem, size = 0x400, scoped, tag = 'output window, operand 0, single buffered']
    %7 = vsyncpa [#allocation4], 0
    %8 = vsyncpa [#allocation7], 0
    %9 = vsyncpa [#allocation5], 0
    // Predicated region
    $region2: #{tpu_custom_call.1} parent=1 // pred_check
      _
    $region3: #{tpu_custom_call.1} parent=1 // pred_check_branch
      %11 = sbr.rel (0) target = $region5
    $region4: #{tpu_custom_call.1} parent=1 // pred_region
      %s12 = sadd.s32 0, 0
      %p13 = scmp.lt.s32.totalorder %s12, 0
      %s14 = scalar_select %p13, %s12, 0
      %s15 = smul.u32 2, %s14
      %s17 = ssub.s32 256, 256
      %18 = vsyncadd [#allocation4], %s17
      %s19 = smul.addr %s15, 128
      %s20 = scalar_lea.hbm %s0, %s19
      %s21 = sshll.u32 [#allocation3], 4
      %s22 = int_to_ptr.vmem [resolvable:$true] %s21
      %27 = dma.hbm_to_vmem [thread:$0]  %s20, 256, %s22, [#allocation4], 128, 128, 8
    $region5: #{tpu_custom_call.1} parent=1 // pred_fallthru
      _
    // Predicated region
    $region6: #{tpu_custom_call.1} parent=1 // pred_check
      _
    $region7: #{tpu_custom_call.1} parent=1 // pred_check_branch
      %29 = sbr.rel (0) target = $region9
    $region8: #{tpu_custom_call.1} parent=1 // pred_region
      %s30 = sadd.s32 0, 0
      %p31 = scmp.lt.s32.totalorder %s30, 0
      %s32 = scalar_select %p31, %s30, 0
      %s33 = smul.u32 2, %s32
      %s35 = ssub.s32 256, 256
      %36 = vsyncadd [#allocation7], %s35
      %s37 = smul.addr %s33, 128
      %s38 = scalar_lea.hbm %s1, %s37
      %s39 = sshll.u32 [#allocation6], 4
      %s40 = int_to_ptr.vmem [resolvable:$true] %s39
      %45 = dma.hbm_to_vmem [thread:$0]  %s38, 256, %s40, [#allocation7], 128, 128, 8
    $region9: #{tpu_custom_call.1} parent=1 // pred_fallthru
      _
    // Predicated region
    $region10: #{tpu_custom_call.1} parent=1 // pred_check
      _
    $region11: #{tpu_custom_call.1} parent=1 // pred_check_branch
      %47 = sbr.rel (0) target = $region13
    $region12: #{tpu_custom_call.1} parent=1 // pred_region
      %48 = dma.done [#allocation4], 256
    $region13: #{tpu_custom_call.1} parent=1 // pred_fallthru
      _
    // Predicated region
    $region14: #{tpu_custom_call.1} parent=1 // pred_check
      _
    $region15: #{tpu_custom_call.1} parent=1 // pred_check_branch
      %50 = sbr.rel (0) target = $region17
    $region16: #{tpu_custom_call.1} parent=1 // pred_region
      %51 = dma.done [#allocation7], 256
    $region17: #{tpu_custom_call.1} parent=1 // pred_fallthru
      _
    %s52 = sadd.s32 0, 0
    %p53 = scmp.lt.s32.totalorder %s52, 0
    %s54 = scalar_select %p53, %s52, 0
    %s55 = smul.u32 2, %s54
    %s56 = sadd.s32 0, 0
    %p57 = scmp.lt.s32.totalorder %s56, 0
    %s58 = scalar_select %p57, %s56, 0
    %s59 = smul.u32 2, %s58
    %v60 = vld [vmem:[#allocation3] sm:$0xff]
    %v61 = vld [vmem:[#allocation3 + $0x8] sm:$0xff]
    %v62 = vsub.f32 1.0, %v60
    %v63 = vsub.f32 1.0, %v61
    %v64 = vsub.f32 %v60, 0.1
    %v65 = vsub.f32 %v61, 0.1
    %v66 = vmax.f32 %v64, 0.0
    %v67 = vmax.f32 %v65, 0.0
    %v68 = vmul.f32 %v66, %v66
    %v69 = vmul.f32 %v67, %v67
    %v70 = vmul.f32 %v68, 2.0
    %v71 = vmul.f32 %v69, 2.0
    %v72 = vld [vmem:[#allocation6] sm:$0xff]
    %v73 = vld [vmem:[#allocation6 + $0x8] sm:$0xff]
    %v74 = vmul.f32 %v62, %v62
    %v75 = vmul.f32 %v63, %v63
    %v76 = vmul.f32 %v72, %v74
    %v77 = vmul.f32 %v73, %v75
    %v78 = vsub.f32 1.0, %v72
    %v79 = vsub.f32 1.0, %v73
    %v80 = vmul.f32 %v78, %v70
    %v81 = vmul.f32 %v79, %v71
    %v82 = vadd.f32 %v76, %v80
    %v83 = vadd.f32 %v77, %v81
    %p84 = scmp.eq.s32.totalorder 0, 0
    // Predicated region
    $region18: #{tpu_custom_call.1} parent=1 // pred_check
      %p85 = pneg %p84
    $region19: #{tpu_custom_call.1} parent=1 // pred_check_branch
      %87 = sbr.rel (%p85) target = $region21
    $region20: #{tpu_custom_call.1} parent=1 // pred_region
      %88 = vst [vmem:[#allocation2] sm:$0xff] %v82
      %89 = vst [vmem:[#allocation2 + $0x8] sm:$0xff] %v83
    $region21: #{tpu_custom_call.1} parent=1 // pred_fallthru
      _
    %p90 = scmp.ne.s32.totalorder 0, 0
    // Predicated region
    $region22: #{tpu_custom_call.1} parent=1 // pred_check
      %p91 = pneg %p90
    $region23: #{tpu_custom_call.1} parent=1 // pred_check_branch
      %93 = sbr.rel (%p91) target = $region25
    $region24: #{tpu_custom_call.1} parent=1 // pred_region
      %v94 = vld [vmem:[#allocation2] sm:$0xff]
      %v95 = vld [vmem:[#allocation2 + $0x8] sm:$0xff]
      %v96 = vadd.f32 %v94, %v82
      %v97 = vadd.f32 %v95, %v83
      %98 = vst [vmem:[#allocation2] sm:$0xff] %v96
      %99 = vst [vmem:[#allocation2 + $0x8] sm:$0xff] %v97
    $region25: #{tpu_custom_call.1} parent=1 // pred_fallthru
      _
    // Predicated region
    $region26: #{tpu_custom_call.1} parent=1 // pred_check
      %p100 = pneg %p84
    $region27: #{tpu_custom_call.1} parent=1 // pred_check_branch
      %102 = sbr.rel (%p100) target = $region29
    $region28: #{tpu_custom_call.1} parent=1 // pred_region
      %v103 = vld [vmem:[#allocation2] sm:$0xff]
      %v104 = vld [vmem:[#allocation2 + $0x8] sm:$0xff]
      %v105 = vadd.f32 %v103, %v104
      %106 = vadd.xlane.f32.xlu0 %v105
      %v107 = vpop.xlane.xlu0 %106
      %v108 = vrot.slane %v107, 4
      %v109 = vadd.f32 %v107, %v108
      %v110 = vrot.slane %v109, 2
      %v111 = vadd.f32 %v109, %v110
      %v112 = vrot.slane %v111, 1
      %v113 = vadd.f32 %v111, %v112
      %s114 = vtos %v113
      %v115 = vstv %s114
      %v116 = vmul.f32 %v115, 0.00048828125
      %vm117 = vcmask 0
      %118 = vst.msk [vmem:[#allocation8] sm:$0x1] %vm117, %v116
    $region29: #{tpu_custom_call.1} parent=1 // pred_fallthru
      _
    // Predicated region
    $region30: #{tpu_custom_call.1} parent=1 // pred_check
      _
    $region31: #{tpu_custom_call.1} parent=1 // pred_check_branch
      %120 = sbr.rel (0) target = $region33
    $region32: #{tpu_custom_call.1} parent=1 // pred_region
      %s122 = ssub.s32 16, 16
      %123 = vsyncadd [#allocation5], %s122
      %s125 = sshll.u32 [#allocation8], 4
      %s126 = int_to_ptr.vmem [resolvable:$true] %s125
      %128 = dma.vmem_to_hbm [thread:$0]  %s126, 16, %s2, [#allocation5]
    $region33: #{tpu_custom_call.1} parent=1 // pred_fallthru
      _
    // Predicated region
    $region34: #{tpu_custom_call.1} parent=1 // pred_check
      _
    $region35: #{tpu_custom_call.1} parent=1 // pred_check_branch
      %130 = sbr.rel (0) target = $region37
    $region36: #{tpu_custom_call.1} parent=1 // pred_region
      %131 = dma.done [#allocation5], 16
    $region37: #{tpu_custom_call.1} parent=1 // pred_fallthru
      _
    %132 = vsyncpa [#allocation4], 1
    %133 = vsyncpa [#allocation7], 1
    %134 = vsyncpa [#allocation5], 1

</llo_original>
